<compile_context>
chip_gen: v7x
topology: tpu7x:2x2x1
jax: 0.10.0
libtpu: 0.0.40
codegen_flags: <defaults>
</compile_context>

<pallas_src>
import functools

import jax
import jax.numpy as jnp
from jax.experimental import pallas as pl
from jax.experimental.pallas import tpu as pltpu

LN_EPS = 1e-5


def _round_up(x, m):
    return (x + m - 1) // m * m


def _cdiv(a, b):
    return (a + b - 1) // b


def _adaln_kernel(a_ref, s_ref, ln_s_w_ref, w_ref, gbias_ref, out_ref, *,
                  c_a, c_a_pad):
    # Load current row tile; math in f32 (HBM inputs may be bf16).
    a = a_ref[...].astype(jnp.float32)        # (tm, c_a)
    s = s_ref[...].astype(jnp.float32)        # (tm, c_s)
    c_s = s.shape[-1]

    # --- LayerNorm(a): no affine. One-pass statistics (sum and sum-of-squares
    # in the same pass); var clamped at 0 against tiny negative cancellation.
    inv_ca = 1.0 / c_a
    a_mean = jnp.sum(a, axis=-1, keepdims=True) * inv_ca
    a_msq = jnp.sum(a * a, axis=-1, keepdims=True) * inv_ca
    a_var = jnp.maximum(a_msq - a_mean * a_mean, 0.0)
    a_n = (a - a_mean) * jax.lax.rsqrt(a_var + LN_EPS)

    # --- LayerNorm(s): elementwise affine, weight only (bias=False).
    inv_cs = 1.0 / c_s
    s_mean = jnp.sum(s, axis=-1, keepdims=True) * inv_cs
    s_msq = jnp.sum(s * s, axis=-1, keepdims=True) * inv_cs
    s_var = jnp.maximum(s_msq - s_mean * s_mean, 0.0)
    s_n = (s - s_mean) * jax.lax.rsqrt(s_var + LN_EPS) * ln_s_w_ref[...]

    # --- Single fused GEMM for [gamma | beta]: (tm, c_s) @ (c_s, 2*c_a_pad).
    # Operands in the weight dtype (bf16 fast path), f32 accumulation.
    lhs = s_n.astype(w_ref.dtype)
    gb = jnp.dot(lhs, w_ref[...], preferred_element_type=jnp.float32)
    gamma = gb[:, :c_a] + gbias_ref[...]                 # bias only on gamma half
    beta = gb[:, c_a_pad:c_a_pad + c_a]

    # --- gated scale + shift
    out_ref[...] = (a_n * jax.nn.sigmoid(gamma) + beta).astype(out_ref.dtype)


def prepare_adaln_params(ln_s_weight, gamma_w, gamma_b, beta_w, *,
                         mxu_dtype=jnp.bfloat16):
    """One-time parameter prep (hoisted out of the per-call hot path).

    ln_s_weight: [c_s]     LayerNorm(s) weight (bias=False)
    gamma_w:     [c_a,c_s] Linear(c_s->c_a) weight, PyTorch (out,in) layout
    gamma_b:     [c_a]
    beta_w:      [c_a,c_s] Linear(c_s->c_a) weight, no bias
    Returns (ln_s_w [1,c_s] f32, w_fused [c_s, 2*c_a_pad] mxu_dtype, gbias [1,c_a] f32).
    """
    c_a, c_s = gamma_w.shape
    c_a_pad = _round_up(c_a, 128)

    def pad_cols(w_t):
        if c_a_pad != c_a:
            return jnp.pad(w_t, ((0, 0), (0, c_a_pad - c_a)))
        return w_t

    w_fused = jnp.concatenate(
        [pad_cols(gamma_w.T), pad_cols(beta_w.T)], axis=1
    ).astype(mxu_dtype)                                       # (c_s, 2*c_a_pad)
    gbias = gamma_b.reshape(1, c_a).astype(jnp.float32)
    ln_s_w = ln_s_weight.reshape(1, c_s).astype(jnp.float32)
    return ln_s_w, w_fused, gbias


@functools.partial(jax.jit, static_argnames=("tm",))
def adaln(a, s, ln_s_w, w_fused, gbias, *, tm=2048):
    """AdaLN forward.  a: [..., c_a], s: [..., c_s], params from prepare_adaln_params."""
    *lead, c_a = a.shape
    c_s = s.shape[-1]
    two_c_a_pad = w_fused.shape[-1]
    c_a_pad = two_c_a_pad // 2

    a2 = a.reshape(-1, c_a)
    s2 = s.reshape(-1, c_s)
    R = a2.shape[0]

    # --- row tile: as large as the VMEM budget allows (amortize the ~0.35us
    # per-grid-step overhead).  Budget counts double-buffered IO tiles at their
    # real dtypes, the (double-buffered) params, AND the f32 compute temporaries
    # (a, a_n, s, s_n, gb, gate) that live in the same scoped VMEM.
    def vmem_need(t):
        io = (2 * t * c_a * a.dtype.itemsize          # a tiles
              + 2 * t * c_s * s.dtype.itemsize        # s tiles
              + 2 * t * c_a * a.dtype.itemsize)       # out tiles
        params = 2 * (c_s * two_c_a_pad * w_fused.dtype.itemsize + (c_s + c_a) * 4)
        temps = t * (3 * c_a + 2 * c_s + two_c_a_pad) * 4
        return io + params + temps

    budget = 40 * 2**20                        # leaves headroom within 64 MiB (v7x)
    tm_eff = max(8, min(tm, _round_up(R, 8)))
    while tm_eff > 256 and vmem_need(tm_eff) > budget:
        tm_eff = _round_up(tm_eff // 2, 8)

    n_steps = _cdiv(R, tm_eff)
    if n_steps > 1 and n_steps % 2 == 1:       # even grid -> balanced v7x megacore
        tm_eff = max(8, min(tm_eff, _round_up(_cdiv(R, n_steps + 1), 8)))
        n_steps = _cdiv(R, tm_eff)

    vmem_limit = int(min(48 * 2**20, max(32 * 2**20, vmem_need(tm_eff) + 8 * 2**20)))

    kernel = functools.partial(_adaln_kernel, c_a=c_a, c_a_pad=c_a_pad)

    out = pl.pallas_call(
        kernel,
        out_shape=jax.ShapeDtypeStruct((R, c_a), a.dtype),
        grid_spec=pl.GridSpec(
            grid=(n_steps,),
            in_specs=[
                pl.BlockSpec((tm_eff, c_a), lambda i: (i, 0)),       # a row tile
                pl.BlockSpec((tm_eff, c_s), lambda i: (i, 0)),       # s row tile
                pl.BlockSpec((1, c_s), lambda i: (0, 0)),            # LN(s) weight
                pl.BlockSpec((c_s, two_c_a_pad), lambda i: (0, 0)),  # fused [Wg|Wb]^T
                pl.BlockSpec((1, c_a), lambda i: (0, 0)),            # gamma bias
            ],
            out_specs=pl.BlockSpec((tm_eff, c_a), lambda i: (i, 0)),
        ),
        compiler_params=pltpu.CompilerParams(
            dimension_semantics=("parallel",),
            vmem_limit_bytes=vmem_limit,
        ),
    )(a2, s2, ln_s_w, w_fused, gbias)

    return out.reshape(*lead, c_a)


def adaln_reference(a, s, ln_s_weight, gamma_w, gamma_b, beta_w):
    """Pure-JAX reference matching the PyTorch forward semantics."""
    def ln(x):
        mu = jnp.mean(x, axis=-1, keepdims=True)
        var = jnp.mean((x - mu) ** 2, axis=-1, keepdims=True)
        return (x - mu) * jax.lax.rsqrt(var + LN_EPS)

    a_n = ln(a)
    s_n = ln(s) * ln_s_weight
    gamma = s_n @ gamma_w.T + gamma_b
    beta = s_n @ beta_w.T
    return a_n * jax.nn.sigmoid(gamma) + beta


if __name__ == "__main__":
    # Small shapes implied by the module: a: [B, N, c_a], s: [B, N, c_s].
    # c_a=32 deliberately exercises the non-128-multiple channel path.
    B, N = 2, 8
    c_a, c_s = 32, 16

    key = jax.random.PRNGKey(0)
    k_a, k_s, k_lnw, k_gw, k_gb, k_bw = jax.random.split(key, 6)

    a = jax.random.normal(k_a, (B, N, c_a), dtype=jnp.float32)
    s = jax.random.normal(k_s, (B, N, c_s), dtype=jnp.float32)

    # Parameters (PyTorch layout): layer_norm_s.weight (c_s,);
    # linear_s_gamma.weight (c_a, c_s) + bias (c_a,); linear_s_beta.weight (c_a, c_s).
    ln_s_weight = 1.0 + 0.1 * jax.random.normal(k_lnw, (c_s,), dtype=jnp.float32)
    gamma_w = 0.2 * jax.random.normal(k_gw, (c_a, c_s), dtype=jnp.float32)
    gamma_b = 0.1 * jax.random.normal(k_gb, (c_a,), dtype=jnp.float32)
    beta_w = 0.2 * jax.random.normal(k_bw, (c_a, c_s), dtype=jnp.float32)

    ref = adaln_reference(a, s, ln_s_weight, gamma_w, gamma_b, beta_w)

    # 1) f32 MXU path: tight validation of the kernel math.
    params_f32 = prepare_adaln_params(ln_s_weight, gamma_w, gamma_b, beta_w,
                                      mxu_dtype=jnp.float32)
    out_f32 = jax.block_until_ready(adaln(a, s, *params_f32))
    assert out_f32.shape == ref.shape
    assert jnp.allclose(out_f32, ref, atol=1e-4, rtol=1e-4), "f32 path mismatch"

    # 2) Default fast path: bf16 MXU operands, f32 accumulation.
    params = prepare_adaln_params(ln_s_weight, gamma_w, gamma_b, beta_w)
    out = jax.block_until_ready(adaln(a, s, *params))
    assert out.shape == ref.shape
    assert jnp.allclose(out, ref, atol=3e-2, rtol=3e-2), "bf16 path mismatch"

    # 3) Ragged-row grid (R=21 not a multiple of the forced tm=8): exercises the
    #    OOB last block handled by Pallas (no wrapper pad/slice).
    a_r = jax.random.normal(k_a, (3, 7, c_a), dtype=jnp.float32)
    s_r = jax.random.normal(k_s, (3, 7, c_s), dtype=jnp.float32)
    ref_r = adaln_reference(a_r, s_r, ln_s_weight, gamma_w, gamma_b, beta_w)
    out_r = jax.block_until_ready(adaln(a_r, s_r, *params_f32, tm=8))
    assert jnp.allclose(out_r, ref_r, atol=1e-4, rtol=1e-4), "ragged path mismatch"

    print("KERNEL_OK")
</pallas_src>

<mosaic_0001>
module attributes {stable_mosaic.version = 11 : i64} {
  func.func @_adaln_kernel(%arg0: i32, %arg1: memref<16x32xf32, #tpu.memory_space<vmem>>, %arg2: memref<16x16xf32, #tpu.memory_space<vmem>>, %arg3: memref<1x16xf32, #tpu.memory_space<vmem>>, %arg4: memref<16x256xf32, #tpu.memory_space<vmem>>, %arg5: memref<1x32xf32, #tpu.memory_space<vmem>>, %arg6: memref<16x32xf32, #tpu.memory_space<vmem>>) attributes {dimension_semantics = [#tpu.dimension_semantics<parallel>], iteration_bounds = array<i64: 1>, scalar_prefetch = 0 : i64, scratch_operands = 0 : i64, tpu.core_type = #tpu.core_type<tc>, window_params = [{transform_indices = @transform_0, window_bounds = array<i64: 16, 32>}, {transform_indices = @transform_1, window_bounds = array<i64: 16, 16>}, {pipeline_mode = #tpu.pipeline_mode<synchronous>, transform_indices = @transform_2, window_bounds = array<i64: 1, 16>}, {pipeline_mode = #tpu.pipeline_mode<synchronous>, transform_indices = @transform_3, window_bounds = array<i64: 16, 256>}, {pipeline_mode = #tpu.pipeline_mode<synchronous>, transform_indices = @transform_4, window_bounds = array<i64: 1, 32>}, {transform_indices = @transform_5, window_bounds = array<i64: 16, 32>}]} {
    %c0 = arith.constant 0 : index
    %c0_0 = arith.constant 0 : index
    %0 = vector.load %arg1[%c0, %c0_0] : memref<16x32xf32, #tpu.memory_space<vmem>>, vector<16x32xf32>
    %c0_1 = arith.constant 0 : index
    %c0_2 = arith.constant 0 : index
    %1 = vector.load %arg2[%c0_1, %c0_2] : memref<16x16xf32, #tpu.memory_space<vmem>>, vector<16x16xf32>
    %cst = arith.constant dense<0.000000e+00> : vector<16xf32>
    %2 = vector.multi_reduction <add>, %0, %cst [1] : vector<16x32xf32> to vector<16xf32>
    %3 = vector.shape_cast %2 : vector<16xf32> to vector<16x1xf32>
    %cst_3 = arith.constant 3.125000e-02 : f32
    %4 = vector.broadcast %cst_3 : f32 to vector<16x1xf32>
    %5 = arith.mulf %3, %4 : vector<16x1xf32>
    %6 = arith.mulf %0, %0 : vector<16x32xf32>
    %cst_4 = arith.constant dense<0.000000e+00> : vector<16xf32>
    %7 = vector.multi_reduction <add>, %6, %cst_4 [1] : vector<16x32xf32> to vector<16xf32>
    %8 = vector.shape_cast %7 : vector<16xf32> to vector<16x1xf32>
    %cst_5 = arith.constant 3.125000e-02 : f32
    %9 = vector.broadcast %cst_5 : f32 to vector<16x1xf32>
    %10 = arith.mulf %8, %9 : vector<16x1xf32>
    %11 = arith.mulf %5, %5 : vector<16x1xf32>
    %12 = arith.subf %10, %11 : vector<16x1xf32>
    %cst_6 = arith.constant 0.000000e+00 : f32
    %13 = vector.broadcast %cst_6 : f32 to vector<16x1xf32>
    %14 = arith.maximumf %12, %13 : vector<16x1xf32>
    %15 = vector.broadcast %5 : vector<16x1xf32> to vector<16x32xf32>
    %16 = arith.subf %0, %15 : vector<16x32xf32>
    %cst_7 = arith.constant 9.99999974E-6 : f32
    %17 = vector.broadcast %cst_7 : f32 to vector<16x1xf32>
    %18 = arith.addf %14, %17 : vector<16x1xf32>
    %19 = math.rsqrt %18 : vector<16x1xf32>
    %20 = vector.broadcast %19 : vector<16x1xf32> to vector<16x32xf32>
    %21 = arith.mulf %16, %20 : vector<16x32xf32>
    %cst_8 = arith.constant dense<0.000000e+00> : vector<16xf32>
    %22 = vector.multi_reduction <add>, %1, %cst_8 [1] : vector<16x16xf32> to vector<16xf32>
    %23 = vector.shape_cast %22 : vector<16xf32> to vector<16x1xf32>
    %cst_9 = arith.constant 6.250000e-02 : f32
    %24 = vector.broadcast %cst_9 : f32 to vector<16x1xf32>
    %25 = arith.mulf %23, %24 : vector<16x1xf32>
    %26 = arith.mulf %1, %1 : vector<16x16xf32>
    %cst_10 = arith.constant dense<0.000000e+00> : vector<16xf32>
    %27 = vector.multi_reduction <add>, %26, %cst_10 [1] : vector<16x16xf32> to vector<16xf32>
    %28 = vector.shape_cast %27 : vector<16xf32> to vector<16x1xf32>
    %cst_11 = arith.constant 6.250000e-02 : f32
    %29 = vector.broadcast %cst_11 : f32 to vector<16x1xf32>
    %30 = arith.mulf %28, %29 : vector<16x1xf32>
    %31 = arith.mulf %25, %25 : vector<16x1xf32>
    %32 = arith.subf %30, %31 : vector<16x1xf32>
    %cst_12 = arith.constant 0.000000e+00 : f32
    %33 = vector.broadcast %cst_12 : f32 to vector<16x1xf32>
    %34 = arith.maximumf %32, %33 : vector<16x1xf32>
    %35 = vector.broadcast %25 : vector<16x1xf32> to vector<16x16xf32>
    %36 = arith.subf %1, %35 : vector<16x16xf32>
    %cst_13 = arith.constant 9.99999974E-6 : f32
    %37 = vector.broadcast %cst_13 : f32 to vector<16x1xf32>
    %38 = arith.addf %34, %37 : vector<16x1xf32>
    %39 = math.rsqrt %38 : vector<16x1xf32>
    %40 = vector.broadcast %39 : vector<16x1xf32> to vector<16x16xf32>
    %41 = arith.mulf %36, %40 : vector<16x16xf32>
    %c0_14 = arith.constant 0 : index
    %c0_15 = arith.constant 0 : index
    %42 = vector.load %arg3[%c0_14, %c0_15] : memref<1x16xf32, #tpu.memory_space<vmem>>, vector<1x16xf32>
    %43 = vector.broadcast %42 : vector<1x16xf32> to vector<16x16xf32>
    %44 = arith.mulf %41, %43 : vector<16x16xf32>
    %c0_16 = arith.constant 0 : index
    %c0_17 = arith.constant 0 : index
    %45 = vector.load %arg4[%c0_16, %c0_17] : memref<16x256xf32, #tpu.memory_space<vmem>>, vector<16x256xf32>
    %cst_18 = arith.constant dense<0.000000e+00> : vector<16x256xf32>
    %46 = tpu.matmul %44, %45, %cst_18 {dimension_numbers = #tpu.dot_dimension_numbers<[1], [0], [0], [1], [0, 0, 1, 1], [], []>} : vector<16x16xf32>, vector<16x256xf32>, vector<16x256xf32> -> vector<16x256xf32>
    %47 = vector.extract_strided_slice %46 {offsets = [0, 0], sizes = [16, 32], strides = [1, 1]} : vector<16x256xf32> to vector<16x32xf32>
    %c0_19 = arith.constant 0 : index
    %c0_20 = arith.constant 0 : index
    %48 = vector.load %arg5[%c0_19, %c0_20] : memref<1x32xf32, #tpu.memory_space<vmem>>, vector<1x32xf32>
    %49 = vector.broadcast %48 : vector<1x32xf32> to vector<16x32xf32>
    %50 = arith.addf %47, %49 : vector<16x32xf32>
    %51 = vector.extract_strided_slice %46 {offsets = [0, 128], sizes = [16, 32], strides = [1, 1]} : vector<16x256xf32> to vector<16x32xf32>
    %52 = arith.negf %50 : vector<16x32xf32>
    %53 = math.exp %52 : vector<16x32xf32>
    %cst_21 = arith.constant 1.000000e+00 : f32
    %54 = vector.broadcast %cst_21 : f32 to vector<16x32xf32>
    %55 = arith.addf %54, %53 : vector<16x32xf32>
    %56 = arith.divf %54, %55 : vector<16x32xf32>
    %57 = arith.mulf %21, %56 : vector<16x32xf32>
    %58 = arith.addf %57, %51 : vector<16x32xf32>
    %c0_22 = arith.constant 0 : index
    %c0_23 = arith.constant 0 : index
    %59 = vector.load %arg6[%c0_22, %c0_23] : memref<16x32xf32, #tpu.memory_space<vmem>>, vector<16x32xf32>
    tpu.vector_store %arg6[%c0_22, %c0_23], %58 {strides = array<i32>} : memref<16x32xf32, #tpu.memory_space<vmem>>, vector<16x32xf32>,
    return
  }
  func.func @transform_0(%arg0: i32) -> (i32, i32) {
    %c0_i32 = arith.constant 0 : i32
    %c0_i32_0 = arith.constant 0 : i32
    return %arg0, %c0_i32 : i32, i32
  }
  func.func @transform_1(%arg0: i32) -> (i32, i32) {
    %c0_i32 = arith.constant 0 : i32
    %c0_i32_0 = arith.constant 0 : i32
    return %arg0, %c0_i32 : i32, i32
  }
  func.func @transform_2(%arg0: i32) -> (i32, i32) {
    %c0_i32 = arith.constant 0 : i32
    %c0_i32_0 = arith.constant 0 : i32
    %c0_i32_1 = arith.constant 0 : i32
    return %c0_i32, %c0_i32_0 : i32, i32
  }
  func.func @transform_3(%arg0: i32) -> (i32, i32) {
    %c0_i32 = arith.constant 0 : i32
    %c0_i32_0 = arith.constant 0 : i32
    %c0_i32_1 = arith.constant 0 : i32
    return %c0_i32, %c0_i32_0 : i32, i32
  }
  func.func @transform_4(%arg0: i32) -> (i32, i32) {
    %c0_i32 = arith.constant 0 : i32
    %c0_i32_0 = arith.constant 0 : i32
    %c0_i32_1 = arith.constant 0 : i32
    return %c0_i32, %c0_i32_0 : i32, i32
  }
  func.func @transform_5(%arg0: i32) -> (i32, i32) {
    %c0_i32 = arith.constant 0 : i32
    %c0_i32_0 = arith.constant 0 : i32
    return %arg0, %c0_i32 : i32, i32
  }
}

</mosaic_0001>

<llo_original>
// kernel: adaln.1
$region0: #{adaln.1}
  #allocation0 [shape = 'u32[]', space=smem, size = 0x4, offset = 0x4, fixed_abs, tag = 'smem constant byte address 0x4 - core index']
  #allocation1 [shape = 'u32[144,128]{1,0:T(1,128)}', space=vmem, size = 0x12000, scoped, tag = 'internal scratch']
  %s0 = inlined_call_operand.hbm [shape: f32[16,32], index: 0, kind: input, shape index: {}]
  %s1 = inlined_call_operand.hbm [shape: f32[16,16], index: 1, kind: input, shape index: {}]
  %s2 = inlined_call_operand.vmem [shape: f32[1,16], index: 2, kind: input, shape index: {}]
  %s3 = inlined_call_operand.hbm [shape: f32[16,256], index: 3, kind: input, shape index: {}]
  %s4 = inlined_call_operand.vmem [shape: f32[1,32], index: 4, kind: input, shape index: {}]
  %s5 = inlined_call_operand.hbm [shape: f32[16,32], index: 5, kind: output, shape index: {}]
  %s6 = sld [smem:[#allocation0]]
  $region42: #{adaln.1} parent=0
    _
  %s8 = ssub.s32 1, %s6
  %s9 = scalar_select 0, %s8, %s6
  $region1: #{adaln.1} parent=0
    #allocation2 [shape = 'u8[8192]{0}', space=vmem, size = 0x2000, scoped, tag = 'input window, operand 0, single buffered']
    #allocation3 [shape = 's32[1]{0}', space=sflag, size = 0x4, scoped, tag = 'scoped memory for adaln.1']
    #allocation4 [shape = 's32[1]{0}', space=sflag, size = 0x4, scoped, tag = 'scoped memory for adaln.1']
    #allocation5 [shape = 'u8[8192]{0}', space=vmem, size = 0x2000, scoped, tag = 'input window, operand 1, single buffered']
    #allocation6 [shape = 's32[1]{0}', space=sflag, size = 0x4, scoped, tag = 'scoped memory for adaln.1']
    #allocation7 [shape = 'u8[16384]{0}', space=vmem, size = 0x4000, scoped, tag = 'input window, operand 3, single buffered']
    #allocation8 [shape = 'u8[8192]{0}', space=vmem, size = 0x2000, scoped, tag = 'output window, operand 0, single buffered']
    %10 = vsyncpa [#allocation3], 0
    %11 = vsyncpa [#allocation6], 0
    %12 = vsyncpa [#allocation4], 0
    // Predicated region
    $region2: #{adaln.1} parent=1 // pred_check
      _
    $region3: #{adaln.1} parent=1 // pred_check_branch
      %14 = sbr.rel (0) target = $region5
    $region4: #{adaln.1} parent=1 // pred_region
      %s16 = ssub.s32 256, 256
      %17 = vsyncadd [#allocation3], %s16
      %s18 = sshll.u32 [#allocation2], 4
      %s19 = int_to_ptr.vmem [resolvable:$true] %s18
      %24 = dma.hbm_to_vmem [thread:$0]  %s0, 256, %s19, [#allocation3], 128, 128, 8
    $region5: #{adaln.1} parent=1 // pred_fallthru
      _
    // Predicated region
    $region6: #{adaln.1} parent=1 // pred_check
      _
    $region7: #{adaln.1} parent=1 // pred_check_branch
      %26 = sbr.rel (0) target = $region9
    $region8: #{adaln.1} parent=1 // pred_region
      %s28 = ssub.s32 256, 256
      %29 = vsyncadd [#allocation6], %s28
      %s30 = sshll.u32 [#allocation5], 4
      %s31 = int_to_ptr.vmem [resolvable:$true] %s30
      %36 = dma.hbm_to_vmem [thread:$0]  %s1, 256, %s31, [#allocation6], 128, 128, 8
    $region9: #{adaln.1} parent=1 // pred_fallthru
      _
    // Predicated region
    $region10: #{adaln.1} parent=1 // pred_check
      _
    $region11: #{adaln.1} parent=1 // pred_check_branch
      %38 = sbr.rel (0) target = $region13
    $region12: #{adaln.1} parent=1 // pred_region
      _
    $region13: #{adaln.1} parent=1 // pred_fallthru
      _
    // Predicated region
    $region14: #{adaln.1} parent=1 // pred_check
      _
    $region15: #{adaln.1} parent=1 // pred_check_branch
      %40 = sbr.rel (0) target = $region17
    $region16: #{adaln.1} parent=1 // pred_region
      %s42 = ssub.s32 512, 512
      %43 = vsyncadd [#allocation6], %s42
      %s44 = sshll.u32 [#allocation7], 4
      %s45 = int_to_ptr.vmem [resolvable:$true] %s44
      %50 = dma.hbm_to_vmem [thread:$0]  %s3, 512, %s45, [#allocation6], 256, 256, 16
    $region17: #{adaln.1} parent=1 // pred_fallthru
      _
    // Predicated region
    $region18: #{adaln.1} parent=1 // pred_check
      _
    $region19: #{adaln.1} parent=1 // pred_check_branch
      %52 = sbr.rel (0) target = $region21
    $region20: #{adaln.1} parent=1 // pred_region
      _
    $region21: #{adaln.1} parent=1 // pred_fallthru
      _
    // Predicated region
    $region22: #{adaln.1} parent=1 // pred_check
      _
    $region23: #{adaln.1} parent=1 // pred_check_branch
      %54 = sbr.rel (0) target = $region25
    $region24: #{adaln.1} parent=1 // pred_region
      %55 = dma.done [#allocation3], 256
    $region25: #{adaln.1} parent=1 // pred_fallthru
      _
    // Predicated region
    $region26: #{adaln.1} parent=1 // pred_check
      _
    $region27: #{adaln.1} parent=1 // pred_check_branch
      %57 = sbr.rel (0) target = $region29
    $region28: #{adaln.1} parent=1 // pred_region
      %58 = dma.done [#allocation6], 256
    $region29: #{adaln.1} parent=1 // pred_fallthru
      _
    // Predicated region
    $region30: #{adaln.1} parent=1 // pred_check
      _
    $region31: #{adaln.1} parent=1 // pred_check_branch
      %60 = sbr.rel (0) target = $region33
    $region32: #{adaln.1} parent=1 // pred_region
      %61 = dma.done [#allocation6], 512
    $region33: #{adaln.1} parent=1 // pred_fallthru
      _
    %v62 = vld [vmem:[#allocation2] sm:$0xff]
    %v63 = vld [vmem:[#allocation2 + $0x8] sm:$0xff]
    %v64 = vld [vmem:[#allocation5] sm:$0xff]
    %v65 = vld [vmem:[#allocation5 + $0x8] sm:$0xff]
    %vm66 = vcmask 261120
    %v67 = vsel %vm66, %v62, 0.0
    %68 = vadd.xlane.f32.xlu0 %v67
    %v69 = vpop.xlane.xlu0 %68
    %v70 = vsel %vm66, %v63, 0.0
    %71 = vadd.xlane.f32.xlu0 %v70
    %v72 = vpop.xlane.xlu0 %71
    %v73 = vmul.f32 %v69, 0.03125
    %v74 = vmul.f32 %v72, 0.03125
    %v75 = vmul.f32 %v62, %v62
    %v76 = vmul.f32 %v63, %v63
    %v77 = vsel %vm66, %v75, 0.0
    %78 = vadd.xlane.f32.xlu0 %v77
    %v79 = vpop.xlane.xlu0 %78
    %v80 = vsel %vm66, %v76, 0.0
    %81 = vadd.xlane.f32.xlu0 %v80
    %v82 = vpop.xlane.xlu0 %81
    %v83 = vmul.f32 %v79, 0.03125
    %v84 = vmul.f32 %v82, 0.03125
    %v85 = vmul.f32 %v73, %v73
    %v86 = vmul.f32 %v74, %v74
    %v87 = vsub.f32 %v83, %v85
    %v88 = vsub.f32 %v84, %v86
    %v89 = vmax.f32 %v87, 0.0
    %v90 = vmax.f32 %v88, 0.0
    %v91 = vsub.f32 %v62, %v73
    %v92 = vsub.f32 %v63, %v74
    %v93 = vadd.f32 %v89, 1e-05
    %v94 = vadd.f32 %v90, 1e-05
    %v95 = vrsqrt.pop %v93
    %v96 = vrsqrt.pop %v94
    %v97 = vmul.f32 %v91, %v95
    %v98 = vmul.f32 %v92, %v96
    %vm99 = vcmask 130048
    %v100 = vsel %vm99, %v64, 0.0
    %101 = vadd.xlane.f32.xlu0 %v100
    %v102 = vpop.xlane.xlu0 %101
    %v103 = vsel %vm99, %v65, 0.0
    %104 = vadd.xlane.f32.xlu0 %v103
    %v105 = vpop.xlane.xlu0 %104
    %v106 = vmul.f32 %v102, 0.0625
    %v107 = vmul.f32 %v105, 0.0625
    %v108 = vmul.f32 %v64, %v64
    %v109 = vmul.f32 %v65, %v65
    %v110 = vsel %vm99, %v108, 0.0
    %111 = vadd.xlane.f32.xlu0 %v110
    %v112 = vpop.xlane.xlu0 %111
    %v113 = vsel %vm99, %v109, 0.0
    %114 = vadd.xlane.f32.xlu0 %v113
    %v115 = vpop.xlane.xlu0 %114
    %v116 = vmul.f32 %v112, 0.0625
    %v117 = vmul.f32 %v115, 0.0625
    %v118 = vmul.f32 %v106, %v106
    %v119 = vmul.f32 %v107, %v107
    %v120 = vsub.f32 %v116, %v118
    %v121 = vsub.f32 %v117, %v119
    %v122 = vmax.f32 %v120, 0.0
    %v123 = vmax.f32 %v121, 0.0
    %v124 = vsub.f32 %v64, %v106
    %v125 = vsub.f32 %v65, %v107
    %v126 = vadd.f32 %v122, 1e-05
    %v127 = vadd.f32 %v123, 1e-05
    %v128 = vrsqrt.pop %v126
    %v129 = vrsqrt.pop %v127
    %v130 = vmul.f32 %v124, %v128
    %v131 = vmul.f32 %v125, %v129
    %v132 = vld [vmem:[%s2] sm:$0x1]
    %v134 = vlaneseq
    %v135 = vshrl.u32 %v134, 7
    %v136 = vsub.s32 0, %v135
    %v137 = vrot.slane %v132, %v136
    %v139 = vmul.f32 %v130, %v137
    %v140 = vmul.f32 %v131, %v137
    %v141 = vld [vmem:[#allocation7] sm:$0xff]
    %v142 = vld [vmem:[#allocation7 + $0x8] sm:$0xff]
    %v143 = vld [vmem:[#allocation7 + $0x10] sm:$0xff]
    %v144 = vld [vmem:[#allocation7 + $0x18] sm:$0xff]
    %v146 = vsel %vm99, %v139, 0
    %v149 = vsel %vm99, %v140, 0
    %151 = vmatprep.subr.mxu0 %v142
    %152 = vmatpush1.msra.mxu0 %v141
    %153 = vmatprep.subr.mxu0 %v144
    %154 = vmatpush1.msra.mxu0 %v143
    %155 = vmatprep.subr.mxu0 0.0
    %156 = vmatpush1.msra.mxu0 0.0
    %157 = vmatprep.subr.mxu0 0.0
    %158 = vmatpush1.msra.mxu0 0.0
    %159 = vmatprep.subr.mxu0 0.0
    %160 = vmatpush1.msra.mxu0 0.0
    %161 = vmatprep.subr.mxu0 0.0
    %162 = vmatpush1.msra.mxu0 0.0
    %163 = vmatprep.subr.mxu0 0.0
    %164 = vmatpush1.msra.mxu0 0.0
    %165 = vmatprep.subr.mxu0 0.0
    %166 = vmatpush1.msra.mxu0 0.0
    %167 = vmatprep.subr.mxu0 0.0
    %168 = vmatpush1.msra.mxu0 0.0
    %169 = vmatprep.subr.mxu0 0.0
    %170 = vmatpush1.msra.mxu0 0.0
    %171 = vmatprep.subr.mxu0 0.0
    %172 = vmatpush1.msra.mxu0 0.0
    %173 = vmatprep.subr.mxu0 0.0
    %174 = vmatpush1.msra.mxu0 0.0
    %175 = vmatprep.subr.mxu0 0.0
    %176 = vmatpush1.msra.mxu0 0.0
    %177 = vmatprep.subr.mxu0 0.0
    %178 = vmatpush1.msra.mxu0 0.0
    %179 = vmatprep.subr.mxu0 0.0
    %180 = vmatpush1.msra.mxu0 0.0
    %181 = vmatprep.subr.mxu0 0.0
    %182 = vmatpush1.msra.mxu0 0.0
    %183 = vmatprep.subr.mxu0 0.0
    %184 = vmatpush1.msra.mxu0 0.0
    %185 = vmatprep.subr.mxu0 0.0
    %186 = vmatpush1.msra.mxu0 0.0
    %187 = vmatprep.subr.mxu0 0.0
    %188 = vmatpush1.msra.mxu0 0.0
    %189 = vmatprep.subr.mxu0 0.0
    %190 = vmatpush1.msra.mxu0 0.0
    %191 = vmatprep.subr.mxu0 0.0
    %192 = vmatpush1.msra.mxu0 0.0
    %193 = vmatprep.subr.mxu0 0.0
    %194 = vmatpush1.msra.mxu0 0.0
    %195 = vmatprep.subr.mxu0 0.0
    %196 = vmatpush1.msra.mxu0 0.0
    %197 = vmatprep.subr.mxu0 0.0
    %198 = vmatpush1.msra.mxu0 0.0
    %199 = vmatprep.subr.mxu0 0.0
    %200 = vmatpush1.msra.mxu0 0.0
    %201 = vmatprep.subr.mxu0 0.0
    %202 = vmatpush1.msra.mxu0 0.0
    %203 = vmatprep.subr.mxu0 0.0
    %204 = vmatpush1.msra.mxu0 0.0
    %205 = vmatprep.subr.mxu0 0.0
    %206 = vmatpush1.msra.mxu0 0.0
    %207 = vmatprep.subr.mxu0 0.0
    %208 = vmatpush1.msra.mxu0 0.0
    %209 = vmatprep.subr.mxu0 0.0
    %210 = vmatpush1.msra.mxu0 0.0
    %211 = vmatprep.subr.mxu0 0.0
    %212 = vmatpush1.msra.mxu0 0.0
    %213 = vmatprep.subr.mxu0 0.0
    %214 = vmatpush1.msra.mxu0 0.0
    %215 = vmatprep.mubr.f32.mxu0 0.0
    %216 = vmatmul.mubr.f32.gmra.mrb[0].mxu0 %v146
    %v217 = vpop.f32.mrb[0].mxu0
    %v218 = vadd.f32 0.0, %v217
    %v219 = vpop.f32.mrb[0].mxu0
    %v220 = vadd.f32 0.0, %v219
    %221 = vmatprep.mubr.f32.mxu0 0.0
    %222 = vmatmul.mubr.f32.gmra.mrb[0].mxu0 %v149
    %v223 = vpop.f32.mrb[0].mxu0
    %v224 = vadd.f32 0.0, %v223
    %v225 = vpop.f32.mrb[0].mxu0
    %v226 = vadd.f32 0.0, %v225
    %227 = vdwg.mxu0
    %v228 = vld [vmem:[%s4] sm:$0x1]
    %v230 = vlaneseq
    %v231 = vshrl.u32 %v230, 7
    %v232 = vsub.s32 0, %v231
    %v233 = vrot.slane %v228, %v232
    %v235 = vadd.f32 %v218, %v233
    %v236 = vadd.f32 %v224, %v233
    %v237 = vxor.u32 %v235, 2147483648
    %v238 = vxor.u32 %v236, 2147483648
    %v239 = vmul.f32 %v237, 1.442695
    %v240 = vpow.pop %v239
    %v241 = vmul.f32 %v238, 1.442695
    %v242 = vpow.pop %v241
    %v243 = vadd.f32 %v240, 1.0
    %v244 = vadd.f32 %v242, 1.0
    %v245 = vrcp.pop %v243
    %v246 = vmul.f32 1.0, %v245
    %v247 = vrcp.pop %v244
    %v248 = vmul.f32 1.0, %v247
    %v249 = vmul.f32 %v97, %v246
    %v250 = vmul.f32 %v98, %v248
    %v251 = vadd.f32 %v249, %v220
    %v252 = vadd.f32 %v250, %v226
    %253 = vst.msk [vmem:[#allocation8] sm:$0xff] %vm66, %v251
    %254 = vst.msk [vmem:[#allocation8 + $0x8] sm:$0xff] %vm66, %v252
    // Predicated region
    $region34: #{adaln.1} parent=1 // pred_check
      _
    $region35: #{adaln.1} parent=1 // pred_check_branch
      %256 = sbr.rel (0) target = $region37
    $region36: #{adaln.1} parent=1 // pred_region
      %s258 = ssub.s32 256, 256
      %259 = vsyncadd [#allocation4], %s258
      %s260 = sshll.u32 [#allocation8], 4
      %s261 = int_to_ptr.vmem [resolvable:$true] %s260
      %266 = dma.vmem_to_hbm [thread:$0]  %s261, 256, %s5, [#allocation4], 128, 128, 8
    $region37: #{adaln.1} parent=1 // pred_fallthru
      _
    // Predicated region
    $region38: #{adaln.1} parent=1 // pred_check
      _
    $region39: #{adaln.1} parent=1 // pred_check_branch
      %268 = sbr.rel (0) target = $region41
    $region40: #{adaln.1} parent=1 // pred_region
      %269 = dma.done [#allocation4], 256
    $region41: #{adaln.1} parent=1 // pred_fallthru
      _
    %270 = vsyncpa [#allocation3], 1
    %271 = vsyncpa [#allocation6], 1
    %272 = vsyncpa [#allocation4], 1

</llo_original>
